<compile_context>
chip_gen: v7x
topology: tpu7x:2x2x1
jax: 0.10.0
libtpu: 0.0.40
codegen_flags: <defaults>
</compile_context>

<pallas_src>
import jax
import jax.numpy as jnp
from jax import lax
from jax.experimental import pallas as pl
from jax.experimental.pallas import tpu as pltpu


def _round_up(n, m):
    return ((n + m - 1) // m) * m


def _vmem_budget_bytes():
    """Per-generation VMEM budget: physical capacity minus headroom for compiler scratch."""
    cap = 64 * 1024 * 1024
    try:
        info = pltpu.get_tpu_info()
        cap = int(getattr(info, "vmem_capacity_bytes", cap))
    except Exception:
        pass
    return max(cap - 20 * 1024 * 1024, 32 * 1024 * 1024)


def _blocks_fit(tm, tn, in_dim, er, out_bytes, budget):
    """Double-buffered block sum (A single-buffered, + h scratch) vs. the VMEM budget."""
    dbl = (tm * in_dim * 2      # x tile (bf16)
           + tm * er * 2        # gates tile (bf16)
           + in_dim * tn * 2    # base weight tile (bf16)
           + tn * 4             # bias tile (f32)
           + er * tn * 2        # stacked B tile (bf16)
           + tm * tn * out_bytes)  # output tile
    single = in_dim * er * 2    # stacked A (grid-invariant, single-buffered)
    scratch = tm * er * 2       # h scratch (bf16)
    return 2 * dbl + single + scratch <= budget


def _invariant_spec(block_shape, index_map):
    """BlockSpec for a grid-invariant block; single-buffer it when supported."""
    if hasattr(pl, "Buffered"):
        try:
            return pl.BlockSpec(block_shape, index_map, pipeline_mode=pl.Buffered(1))
        except TypeError:
            pass
    return pl.BlockSpec(block_shape, index_map)


# ----------------------------------------------------------------------------
# Kernel: base linear + gated, stacked LoRA expert mixture
#   out = x @ WbT + b + (gexp * (x @ A_allT)) @ B_all
#   (scaling folded into B_all; gexp = dense gates repeated along the rank dim)
# ----------------------------------------------------------------------------
def _moe_lora_kernel(x_ref, gexp_ref, wb_ref, b_ref, a_all_ref, b_all_ref,
                     out_ref, h_ref):
    # x_ref:     (TM, IN)     bf16
    # gexp_ref:  (TM, ERp)    bf16  dense gates, repeated along the rank dim (padded)
    # wb_ref:    (IN, TN)     bf16  pre-transposed base weight tile
    # b_ref:     (1, TN)      f32   base bias tile
    # a_all_ref: (IN, ERp)    bf16  stacked, pre-transposed LoRA A (padded, grid-invariant)
    # b_all_ref: (ERp, TN)    bf16  stacked LoRA B tile (padded, scaling folded in)
    # out_ref:   (TM, TN)     out_dtype
    # h_ref:     (TM, ERp)    bf16  scratch: gate-scaled LoRA hidden, reused across N tiles

    # The LoRA hidden depends only on the token tile; compute it once per token tile.
    # Valid only because j (the N axis) is innermost / "arbitrary" for a fixed i.
    @pl.when(pl.program_id(1) == 0)
    def _():
        h = jnp.dot(x_ref[...], a_all_ref[...],
                    preferred_element_type=jnp.float32)                 # (TM, ERp) f32
        h_ref[...] = (h * gexp_ref[...].astype(jnp.float32)).astype(h_ref.dtype)

    acc = jnp.dot(x_ref[...], wb_ref[...],
                  preferred_element_type=jnp.float32)                   # base matmul
    acc = acc + b_ref[...]                                              # bias broadcast
    acc = acc + jnp.dot(h_ref[...], b_all_ref[...],
                        preferred_element_type=jnp.float32)             # expert sum
    out_ref[...] = acc.astype(out_ref.dtype)


def moe_lora_pallas(x_bf16, gates_exp, wb_t, bias, a_all_t, b_all, *,
                    tm, tn, out_dtype, vmem_limit_bytes):
    T_pad, IN = x_bf16.shape
    OUT_pad = wb_t.shape[1]
    ERp = a_all_t.shape[1]
    grid = (T_pad // tm, OUT_pad // tn)

    out_bytes = jnp.dtype(out_dtype).itemsize
    flops = 2 * T_pad * IN * (OUT_pad + ERp) + 2 * T_pad * ERp * OUT_pad
    bytes_accessed = (x_bf16.size * 2 + gates_exp.size * 2 + wb_t.size * 2
                      + bias.size * 4 + a_all_t.size * 2 + b_all.size * 2
                      + T_pad * OUT_pad * out_bytes)

    return pl.pallas_call(
        _moe_lora_kernel,
        out_shape=jax.ShapeDtypeStruct((T_pad, OUT_pad), out_dtype),
        grid_spec=pltpu.PrefetchScalarGridSpec(
            num_scalar_prefetch=0,
            grid=grid,
            in_specs=[
                pl.BlockSpec((tm, IN), lambda i, j: (i, 0)),     # x tokens
                pl.BlockSpec((tm, ERp), lambda i, j: (i, 0)),    # expanded gates (bf16)
                pl.BlockSpec((IN, tn), lambda i, j: (0, j)),     # base weight tile
                pl.BlockSpec((1, tn), lambda i, j: (0, j)),      # base bias tile
                _invariant_spec((IN, ERp), lambda i, j: (0, 0)),  # stacked LoRA A (1-buffered)
                pl.BlockSpec((ERp, tn), lambda i, j: (0, j)),    # stacked LoRA B tile
            ],
            out_specs=pl.BlockSpec((tm, tn), lambda i, j: (i, j)),
            scratch_shapes=[pltpu.VMEM((tm, ERp), jnp.bfloat16)],
        ),
        compiler_params=pltpu.CompilerParams(
            dimension_semantics=("parallel", "arbitrary"),
            vmem_limit_bytes=int(vmem_limit_bytes),
        ),
        cost_estimate=pl.CostEstimate(flops=flops, transcendentals=0,
                                      bytes_accessed=bytes_accessed),
    )(x_bf16, gates_exp, wb_t, bias, a_all_t, b_all)


# ----------------------------------------------------------------------------
# Full forward (router / top-k gating glue + weight pre-packing)
# ----------------------------------------------------------------------------
def mixture_of_linear_forward(x, params, *, num_experts_per_tok, scaling,
                              tm=512, tn=512, out_dtype=jnp.float32):
    bs, seq, in_dim = x.shape
    w_base = params["w_base"]        # (OUT, IN)
    b_base = params["b_base"]        # (1, OUT)
    w_router = params["w_router"]    # (E, IN)
    lora_a = params["lora_a"]        # (E, R, IN)
    lora_b = params["lora_b"]        # (E, OUT, R)
    OUT, IN = w_base.shape
    E, R, _ = lora_a.shape
    ER = E * R
    ERp = _round_up(ER, 128)         # lane-dense / full-MXU LoRA path
    T = bs * seq
    x_flat = x.reshape(T, in_dim)

    # --- router (tiny, lane-sparse output: leave it to XLA) ----------------------------
    logits = x_flat @ w_router.T                                    # (T, E), f32
    vals, sel = lax.top_k(logits, num_experts_per_tok)              # (T, k)
    weights = jax.nn.softmax(vals, axis=-1)                         # router_norm='softmax'
    # dense (T, E) gates: equivalent to the one_hot / index_add_ sparse dispatch
    gates = jnp.sum(jax.nn.one_hot(sel, E, dtype=jnp.float32)
                    * weights[..., None], axis=1)                   # (T, E)
    # e-major, r-minor expansion so the kernel does a plain lane mul; pad to ERp; bf16
    gates_exp = jnp.repeat(gates, R, axis=1)                        # (T, E*R)
    gates_exp = jnp.pad(gates_exp, ((0, 0), (0, ERp - ER))).astype(jnp.bfloat16)

    # --- tile sizing against the per-generation VMEM budget ---------------------------
    out_bytes = jnp.dtype(out_dtype).itemsize
    budget = _vmem_budget_bytes()
    tm_eff = min(tm, _round_up(T, 16))
    tn_eff = OUT if OUT <= tn else tn
    # shrink the output tile first (keeps the token tile, the main re-stream lever)
    while (OUT > tn_eff or tn_eff > 128) and tn_eff > 128 \
            and not _blocks_fit(tm_eff, tn_eff, IN, ERp, out_bytes, budget):
        tn_eff = max(128, tn_eff // 2)
    while tm_eff > 16 and not _blocks_fit(tm_eff, tn_eff, IN, ERp, out_bytes, budget):
        tm_eff = max(16, _round_up(tm_eff // 2, 8))

    # --- pad OUT to a multiple of the output tile (sliced off after the kernel) -------
    if OUT <= tn_eff:
        tn_eff = OUT
        OUT_pad = OUT
    else:
        OUT_pad = _round_up(OUT, tn_eff)

    # --- pre-transpose / stack / pad / cast weights once in the wrapper ---------------
    wb_t = jnp.pad(w_base.T, ((0, 0), (0, OUT_pad - OUT))).astype(jnp.bfloat16)   # (IN, OUTp)
    a_all_t = jnp.pad(lora_a.reshape(ER, IN).T,
                      ((0, 0), (0, ERp - ER))).astype(jnp.bfloat16)               # (IN, ERp)
    b_all = jnp.transpose(lora_b, (0, 2, 1)).reshape(ER, OUT) * scaling           # scale folded
    b_all = jnp.pad(b_all, ((0, ERp - ER), (0, OUT_pad - OUT))).astype(jnp.bfloat16)  # (ERp, OUTp)
    bias = jnp.pad(jnp.asarray(b_base, jnp.float32).reshape(1, OUT),
                   ((0, 0), (0, OUT_pad - OUT)))                                  # (1, OUTp)
    x_bf16 = x_flat.astype(jnp.bfloat16)

    # --- token padding (pl.cdiv instead of silently dropping a ragged tail) -----------
    T_pad = pl.cdiv(T, tm_eff) * tm_eff
    if T_pad != T:
        pad = T_pad - T
        x_bf16 = jnp.pad(x_bf16, ((0, pad), (0, 0)))
        gates_exp = jnp.pad(gates_exp, ((0, pad), (0, 0)))

    out_flat = moe_lora_pallas(x_bf16, gates_exp, wb_t, bias, a_all_t, b_all,
                               tm=tm_eff, tn=tn_eff, out_dtype=out_dtype,
                               vmem_limit_bytes=budget)
    return out_flat[:T, :OUT].reshape(bs, seq, OUT)


# ----------------------------------------------------------------------------
# Pure-JAX (f32) reference for correctness check
# ----------------------------------------------------------------------------
def reference_forward(x, params, *, num_experts_per_tok, scaling):
    bs, seq, in_dim = x.shape
    x_flat = x.reshape(bs * seq, in_dim)
    base = x_flat @ params["w_base"].T + params["b_base"]
    logits = x_flat @ params["w_router"].T
    vals, sel = lax.top_k(logits, num_experts_per_tok)
    weights = jax.nn.softmax(vals, axis=-1)
    E = params["w_router"].shape[0]
    gates = jnp.sum(jax.nn.one_hot(sel, E, dtype=jnp.float32) * weights[..., None],
                    axis=1)
    lora = jnp.zeros_like(base)
    for e in range(E):
        h = x_flat @ params["lora_a"][e].T
        y = h @ params["lora_b"][e].T
        lora = lora + gates[:, e:e + 1] * y * scaling
    return (base + lora).reshape(bs, seq, -1)


if __name__ == "__main__":
    # Small shapes consistent with the module's forward.
    bs, seq = 2, 8
    in_features, out_features = 32, 32
    num_experts, num_experts_per_tok = 4, 2
    r, lora_alpha = 8, 16
    scaling = lora_alpha / r            # non-rslora scaling

    key = jax.random.PRNGKey(0)
    k_x, k_wb, k_bb, k_wr, k_a, k_b = jax.random.split(key, 6)

    x = jax.random.normal(k_x, (bs, seq, in_features), dtype=jnp.float32)
    params = {
        "w_base": jax.random.normal(k_wb, (out_features, in_features), jnp.float32) * 0.1,
        "b_base": jax.random.normal(k_bb, (1, out_features), jnp.float32) * 0.1,
        "w_router": jax.random.normal(k_wr, (num_experts, in_features), jnp.float32) * 0.1,
        # lora_B is zero-init in PEFT; use a small nonzero B so the expert path is exercised.
        "lora_a": jax.random.normal(k_a, (num_experts, r, in_features), jnp.float32) * 0.1,
        "lora_b": jax.random.normal(k_b, (num_experts, out_features, r), jnp.float32) * 0.1,
    }

    out = mixture_of_linear_forward(
        x, params, num_experts_per_tok=num_experts_per_tok, scaling=scaling)
    out = jax.block_until_ready(out)

    ref = reference_forward(
        x, params, num_experts_per_tok=num_experts_per_tok, scaling=scaling)
    assert out.shape == (bs, seq, out_features)
    max_err = float(jnp.max(jnp.abs(out - ref)))
    # matmuls run in bf16 with f32 accumulation -> loose tolerance vs the f32 reference
    assert max_err < 5e-2, f"max abs err = {max_err}"

    print("KERNEL_OK")
</pallas_src>

<mosaic_0001>
module attributes {stable_mosaic.version = 11 : i64} {
  func.func @_moe_lora_kernel(%arg0: i32, %arg1: i32, %arg2: memref<16x32xbf16, #tpu.memory_space<vmem>>, %arg3: memref<16x128xbf16, #tpu.memory_space<vmem>>, %arg4: memref<32x32xbf16, #tpu.memory_space<vmem>>, %arg5: memref<1x32xf32, #tpu.memory_space<vmem>>, %arg6: memref<32x128xbf16, #tpu.memory_space<vmem>>, %arg7: memref<128x32xbf16, #tpu.memory_space<vmem>>, %arg8: memref<16x32xf32, #tpu.memory_space<vmem>>, %arg9: memref<16x128xbf16, #tpu.memory_space<vmem>>) attributes {dimension_semantics = [#tpu.dimension_semantics<parallel>, #tpu.dimension_semantics<arbitrary>], iteration_bounds = array<i64: 1, 1>, scalar_prefetch = 0 : i64, scratch_operands = 1 : i64, tpu.core_type = #tpu.core_type<tc>, window_params = [{transform_indices = @transform_0, window_bounds = array<i64: 16, 32>}, {transform_indices = @transform_1, window_bounds = array<i64: 16, 128>}, {transform_indices = @transform_2, window_bounds = array<i64: 32, 32>}, {transform_indices = @transform_3, window_bounds = array<i64: 1, 32>}, {pipeline_mode = #tpu.pipeline_mode<synchronous>, transform_indices = @transform_4, window_bounds = array<i64: 32, 128>}, {transform_indices = @transform_5, window_bounds = array<i64: 128, 32>}, {transform_indices = @transform_6, window_bounds = array<i64: 16, 32>}]} {
    %c0_i32 = arith.constant 0 : i32
    %0 = arith.cmpi eq, %arg1, %c0_i32 : i32
    %1 = arith.extui %0 : i1 to i32
    %c0_i32_0 = arith.constant 0 : i32
    %2 = arith.cmpi ne, %1, %c0_i32_0 : i32
    scf.if %2 {
      %c0_13 = arith.constant 0 : index
      %c0_14 = arith.constant 0 : index
      %14 = vector.load %arg2[%c0_13, %c0_14] : memref<16x32xbf16, #tpu.memory_space<vmem>>, vector<16x32xbf16>
      %c0_15 = arith.constant 0 : index
      %c0_16 = arith.constant 0 : index
      %15 = vector.load %arg6[%c0_15, %c0_16] : memref<32x128xbf16, #tpu.memory_space<vmem>>, vector<32x128xbf16>
      %cst_17 = arith.constant dense<0.000000e+00> : vector<16x128xf32>
      %16 = tpu.matmul %14, %15, %cst_17 {dimension_numbers = #tpu.dot_dimension_numbers<[1], [0], [0], [1], [0, 0, 1, 1], [], []>} : vector<16x32xbf16>, vector<32x128xbf16>, vector<16x128xf32> -> vector<16x128xf32>
      %c0_18 = arith.constant 0 : index
      %c0_19 = arith.constant 0 : index
      %17 = vector.load %arg3[%c0_18, %c0_19] : memref<16x128xbf16, #tpu.memory_space<vmem>>, vector<16x128xbf16>
      %18 = arith.extf %17 : vector<16x128xbf16> to vector<16x128xf32>
      %19 = arith.mulf %16, %18 : vector<16x128xf32>
      %20 = arith.truncf %19 : vector<16x128xf32> to vector<16x128xbf16>
      %c0_20 = arith.constant 0 : index
      %c0_21 = arith.constant 0 : index
      %21 = vector.load %arg9[%c0_20, %c0_21] : memref<16x128xbf16, #tpu.memory_space<vmem>>, vector<16x128xbf16>
      tpu.vector_store %arg9[%c0_20, %c0_21], %20 {strides = array<i32>} : memref<16x128xbf16, #tpu.memory_space<vmem>>, vector<16x128xbf16>,
    } else {
    }
    %c0 = arith.constant 0 : index
    %c0_1 = arith.constant 0 : index
    %3 = vector.load %arg2[%c0, %c0_1] : memref<16x32xbf16, #tpu.memory_space<vmem>>, vector<16x32xbf16>
    %c0_2 = arith.constant 0 : index
    %c0_3 = arith.constant 0 : index
    %4 = vector.load %arg4[%c0_2, %c0_3] : memref<32x32xbf16, #tpu.memory_space<vmem>>, vector<32x32xbf16>
    %cst = arith.constant dense<0.000000e+00> : vector<16x32xf32>
    %5 = tpu.matmul %3, %4, %cst {dimension_numbers = #tpu.dot_dimension_numbers<[1], [0], [0], [1], [0, 0, 1, 1], [], []>} : vector<16x32xbf16>, vector<32x32xbf16>, vector<16x32xf32> -> vector<16x32xf32>
    %c0_4 = arith.constant 0 : index
    %c0_5 = arith.constant 0 : index
    %6 = vector.load %arg5[%c0_4, %c0_5] : memref<1x32xf32, #tpu.memory_space<vmem>>, vector<1x32xf32>
    %7 = vector.broadcast %6 : vector<1x32xf32> to vector<16x32xf32>
    %8 = arith.addf %5, %7 : vector<16x32xf32>
    %c0_6 = arith.constant 0 : index
    %c0_7 = arith.constant 0 : index
    %9 = vector.load %arg9[%c0_6, %c0_7] : memref<16x128xbf16, #tpu.memory_space<vmem>>, vector<16x128xbf16>
    %c0_8 = arith.constant 0 : index
    %c0_9 = arith.constant 0 : index
    %10 = vector.load %arg7[%c0_8, %c0_9] : memref<128x32xbf16, #tpu.memory_space<vmem>>, vector<128x32xbf16>
    %cst_10 = arith.constant dense<0.000000e+00> : vector<16x32xf32>
    %11 = tpu.matmul %9, %10, %cst_10 {dimension_numbers = #tpu.dot_dimension_numbers<[1], [0], [0], [1], [0, 0, 1, 1], [], []>} : vector<16x128xbf16>, vector<128x32xbf16>, vector<16x32xf32> -> vector<16x32xf32>
    %12 = arith.addf %8, %11 : vector<16x32xf32>
    %c0_11 = arith.constant 0 : index
    %c0_12 = arith.constant 0 : index
    %13 = vector.load %arg8[%c0_11, %c0_12] : memref<16x32xf32, #tpu.memory_space<vmem>>, vector<16x32xf32>
    tpu.vector_store %arg8[%c0_11, %c0_12], %12 {strides = array<i32>} : memref<16x32xf32, #tpu.memory_space<vmem>>, vector<16x32xf32>,
    return
  }
  func.func @transform_0(%arg0: i32, %arg1: i32) -> (i32, i32) {
    %c0_i32 = arith.constant 0 : i32
    %c0_i32_0 = arith.constant 0 : i32
    return %arg0, %c0_i32 : i32, i32
  }
  func.func @transform_1(%arg0: i32, %arg1: i32) -> (i32, i32) {
    %c0_i32 = arith.constant 0 : i32
    %c0_i32_0 = arith.constant 0 : i32
    return %arg0, %c0_i32 : i32, i32
  }
  func.func @transform_2(%arg0: i32, %arg1: i32) -> (i32, i32) {
    %c0_i32 = arith.constant 0 : i32
    %c0_i32_0 = arith.constant 0 : i32
    return %c0_i32, %arg1 : i32, i32
  }
  func.func @transform_3(%arg0: i32, %arg1: i32) -> (i32, i32) {
    %c0_i32 = arith.constant 0 : i32
    %c0_i32_0 = arith.constant 0 : i32
    return %c0_i32, %arg1 : i32, i32
  }
  func.func @transform_4(%arg0: i32, %arg1: i32) -> (i32, i32) {
    %c0_i32 = arith.constant 0 : i32
    %c0_i32_0 = arith.constant 0 : i32
    %c0_i32_1 = arith.constant 0 : i32
    return %c0_i32, %c0_i32_0 : i32, i32
  }
  func.func @transform_5(%arg0: i32, %arg1: i32) -> (i32, i32) {
    %c0_i32 = arith.constant 0 : i32
    %c0_i32_0 = arith.constant 0 : i32
    return %c0_i32, %arg1 : i32, i32
  }
  func.func @transform_6(%arg0: i32, %arg1: i32) -> (i32, i32) {
    %c0_i32 = arith.constant 0 : i32
    return %arg0, %arg1 : i32, i32
  }
}

</mosaic_0001>

<llo_original>
// kernel: tpu_custom_call.1
$region0: #{tpu_custom_call.1}
  #allocation0 [shape = 'u32[]', space=smem, size = 0x4, offset = 0x4, fixed_abs, tag = 'smem constant byte address 0x4 - core index']
  #allocation1 [shape = 'u32[144,128]{1,0:T(1,128)}', space=vmem, size = 0x12000, scoped, tag = 'internal scratch']
  #allocation2 [shape = 'bf16[16,128]{1,0:T(16,128)(2,1)}', space=vmem, size = 0x1000, scoped, tag = 'scratch operand']
  %s0 = inlined_call_operand.vmem [shape: bf16[16,32], index: 0, kind: input, shape index: {}]
  %s1 = inlined_call_operand.vmem [shape: bf16[16,128], index: 1, kind: input, shape index: {}]
  %s2 = inlined_call_operand.vmem [shape: bf16[32,32], index: 2, kind: input, shape index: {}]
  %s3 = inlined_call_operand.vmem [shape: f32[1,32], index: 3, kind: input, shape index: {}]
  %s4 = inlined_call_operand.vmem [shape: bf16[32,128], index: 4, kind: input, shape index: {}]
  %s5 = inlined_call_operand.vmem [shape: bf16[128,32], index: 5, kind: input, shape index: {}]
  %s6 = inlined_call_operand.hbm [shape: f32[16,32], index: 6, kind: output, shape index: {}]
  %s7 = sld [smem:[#allocation0]]
  $region38: #{tpu_custom_call.1} parent=0
    _
  %s9 = ssub.s32 1, %s7
  %s10 = scalar_select 0, %s9, %s7
  $region1: #{tpu_custom_call.1} parent=0
    #allocation3 [shape = 'u8[8192]{0}', space=vmem, size = 0x2000, scoped, tag = 'output window, operand 0, single buffered']
    #allocation4 [shape = 's32[1]{0}', space=sflag, size = 0x4, scoped, tag = 'scoped memory for tpu_custom_call.1']
    %11 = vsyncpa [#allocation4], 0
    // Predicated region
    $region2: #{tpu_custom_call.1} parent=1 // pred_check
      _
    $region3: #{tpu_custom_call.1} parent=1 // pred_check_branch
      %13 = sbr.rel (0) target = $region5
    $region4: #{tpu_custom_call.1} parent=1 // pred_region
      _
    $region5: #{tpu_custom_call.1} parent=1 // pred_fallthru
      _
    // Predicated region
    $region6: #{tpu_custom_call.1} parent=1 // pred_check
      _
    $region7: #{tpu_custom_call.1} parent=1 // pred_check_branch
      %15 = sbr.rel (0) target = $region9
    $region8: #{tpu_custom_call.1} parent=1 // pred_region
      _
    $region9: #{tpu_custom_call.1} parent=1 // pred_fallthru
      _
    // Predicated region
    $region10: #{tpu_custom_call.1} parent=1 // pred_check
      _
    $region11: #{tpu_custom_call.1} parent=1 // pred_check_branch
      %17 = sbr.rel (0) target = $region13
    $region12: #{tpu_custom_call.1} parent=1 // pred_region
      _
    $region13: #{tpu_custom_call.1} parent=1 // pred_fallthru
      _
    // Predicated region
    $region14: #{tpu_custom_call.1} parent=1 // pred_check
      _
    $region15: #{tpu_custom_call.1} parent=1 // pred_check_branch
      %19 = sbr.rel (0) target = $region17
    $region16: #{tpu_custom_call.1} parent=1 // pred_region
      _
    $region17: #{tpu_custom_call.1} parent=1 // pred_fallthru
      _
    // Predicated region
    $region18: #{tpu_custom_call.1} parent=1 // pred_check
      _
    $region19: #{tpu_custom_call.1} parent=1 // pred_check_branch
      %21 = sbr.rel (0) target = $region21
    $region20: #{tpu_custom_call.1} parent=1 // pred_region
      _
    $region21: #{tpu_custom_call.1} parent=1 // pred_fallthru
      _
    // Predicated region
    $region22: #{tpu_custom_call.1} parent=1 // pred_check
      _
    $region23: #{tpu_custom_call.1} parent=1 // pred_check_branch
      %23 = sbr.rel (0) target = $region25
    $region24: #{tpu_custom_call.1} parent=1 // pred_region
      _
    $region25: #{tpu_custom_call.1} parent=1 // pred_fallthru
      _
    %p25 = scmp.eq.s32.totalorder 0, 0
    // Predicated region
    $region26: #{tpu_custom_call.1} parent=1 // pred_check
      %p26 = pneg %p25
    $region27: #{tpu_custom_call.1} parent=1 // pred_check_branch
      %28 = sbr.rel (%p26) target = $region29
    $region28: #{tpu_custom_call.1} parent=1 // pred_region
      %v29 = vld [vmem:[%s0] sm:$0xf]
      %v30 = vld [vmem:[%s0 + $0x4] sm:$0xf]
      %v31 = vld [vmem:[%s4] sm:$0xf]
      %v32 = vld [vmem:[%s4 + $0x4] sm:$0xf]
      %v33 = vld [vmem:[%s4 + $0x8] sm:$0xf]
      %v34 = vld [vmem:[%s4 + $0xc] sm:$0xf]
      %v37 = vunpack.c.l.b16 %v29
      %v38 = vunpack.c.l.b16 %v30
      %v39 = vpack.c.b16 %v38, %v37
      %v44 = vunpack.c.l.b16 %v31
      %v45 = vunpack.c.l.b16 %v32
      %v46 = vunpack.c.l.b16 %v33
      %v47 = vunpack.c.l.b16 %v34
      %v48 = vpack.c.b16 %v45, %v44
      %v49 = vpack.c.b16 %v47, %v46
      %vm52 = vcmask 261120
      %v54 = vsel %vm52, %v39, 0
      %56 = vmatprep.subr.bf16.mxu0 0
      %57 = vmatpush1.bf16.msra.mxu0 %v48
      %58 = vmatprep.subr.bf16.mxu0 0
      %59 = vmatpush1.bf16.msra.mxu0 %v49
      %60 = vmatprep.subr.bf16.mxu0 0
      %61 = vmatpush1.bf16.msra.mxu0 0
      %62 = vmatprep.subr.bf16.mxu0 0
      %63 = vmatpush1.bf16.msra.mxu0 0
      %64 = vmatprep.subr.bf16.mxu0 0
      %65 = vmatpush1.bf16.msra.mxu0 0
      %66 = vmatprep.subr.bf16.mxu0 0
      %67 = vmatpush1.bf16.msra.mxu0 0
      %68 = vmatprep.subr.bf16.mxu0 0
      %69 = vmatpush1.bf16.msra.mxu0 0
      %70 = vmatprep.subr.bf16.mxu0 0
      %71 = vmatpush1.bf16.msra.mxu0 0
      %72 = vmatprep.subr.bf16.mxu0 0
      %73 = vmatpush1.bf16.msra.mxu0 0
      %74 = vmatprep.subr.bf16.mxu0 0
      %75 = vmatpush1.bf16.msra.mxu0 0
      %76 = vmatprep.subr.bf16.mxu0 0
      %77 = vmatpush1.bf16.msra.mxu0 0
      %78 = vmatprep.subr.bf16.mxu0 0
      %79 = vmatpush1.bf16.msra.mxu0 0
      %80 = vmatprep.subr.bf16.mxu0 0
      %81 = vmatpush1.bf16.msra.mxu0 0
      %82 = vmatprep.subr.bf16.mxu0 0
      %83 = vmatpush1.bf16.msra.mxu0 0
      %84 = vmatprep.subr.bf16.mxu0 0
      %85 = vmatpush1.bf16.msra.mxu0 0
      %86 = vmatprep.subr.bf16.mxu0 0
      %87 = vmatpush1.bf16.msra.mxu0 0
      %88 = vmatprep.mubr.bf16.mxu0 0
      %89 = vmatmul.mubr.bf16.gmra.mrb[0].mxu0 %v54
      %v90 = vpop.f32.mrb[0].mxu0
      %v91 = vadd.f32 0.0, %v90
      %v92 = vpop.f32.mrb[0].mxu0
      %v93 = vpop.f32.mrb[0].mxu0
      %v94 = vadd.f32 0.0, %v93
      %v95 = vpop.f32.mrb[0].mxu0
      %96 = vdwg.mxu0
      %v97 = vld [vmem:[%s1] sm:$0xf]
      %v98 = vld [vmem:[%s1 + $0x4] sm:$0xf]
      %v99 = vunpack.c.l.bf16 %v97
      %v100 = vunpack.c.l.bf16 %v98
      %v101 = vmul.f32 %v91, %v99
      %v102 = vmul.f32 %v94, %v100
      %v103 = vpack.c.bf16 %v102, %v101
      %104 = vst [vmem:[#allocation2] sm:$0xff] %v103
    $region29: #{tpu_custom_call.1} parent=1 // pred_fallthru
      _
    %v105 = vld [vmem:[%s0] sm:$0xf]
    %v106 = vld [vmem:[%s0 + $0x4] sm:$0xf]
    %v107 = vld [vmem:[%s2] sm:$0xf]
    %v108 = vld [vmem:[%s2 + $0x4] sm:$0xf]
    %v109 = vld [vmem:[%s2 + $0x8] sm:$0xf]
    %v110 = vld [vmem:[%s2 + $0xc] sm:$0xf]
    %v111 = vld [vmem:[%s3] sm:$0x1]
    %v113 = vlaneseq
    %v114 = vshrl.u32 %v113, 7
    %v115 = vsub.s32 0, %v114
    %v116 = vrot.slane %v111, %v115
    %v120 = vunpack.c.l.b16 %v105
    %v121 = vunpack.c.l.b16 %v106
    %v122 = vpack.c.b16 %v121, %v120
    %v127 = vunpack.c.l.b16 %v107
    %v128 = vunpack.c.l.b16 %v108
    %v129 = vunpack.c.l.b16 %v109
    %v130 = vunpack.c.l.b16 %v110
    %v131 = vpack.c.b16 %v128, %v127
    %v132 = vpack.c.b16 %v130, %v129
    %vm135 = vcmask 261120
    %v137 = vsel %vm135, %v122, 0
    %139 = vmatprep.subr.bf16.mxu0 0
    %140 = vmatpush1.bf16.msra.mxu0 %v131
    %141 = vmatprep.subr.bf16.mxu0 0
    %142 = vmatpush1.bf16.msra.mxu0 %v132
    %143 = vmatprep.subr.bf16.mxu0 0
    %144 = vmatpush1.bf16.msra.mxu0 0
    %145 = vmatprep.subr.bf16.mxu0 0
    %146 = vmatpush1.bf16.msra.mxu0 0
    %147 = vmatprep.subr.bf16.mxu0 0
    %148 = vmatpush1.bf16.msra.mxu0 0
    %149 = vmatprep.subr.bf16.mxu0 0
    %150 = vmatpush1.bf16.msra.mxu0 0
    %151 = vmatprep.subr.bf16.mxu0 0
    %152 = vmatpush1.bf16.msra.mxu0 0
    %153 = vmatprep.subr.bf16.mxu0 0
    %154 = vmatpush1.bf16.msra.mxu0 0
    %155 = vmatprep.subr.bf16.mxu0 0
    %156 = vmatpush1.bf16.msra.mxu0 0
    %157 = vmatprep.subr.bf16.mxu0 0
    %158 = vmatpush1.bf16.msra.mxu0 0
    %159 = vmatprep.subr.bf16.mxu0 0
    %160 = vmatpush1.bf16.msra.mxu0 0
    %161 = vmatprep.subr.bf16.mxu0 0
    %162 = vmatpush1.bf16.msra.mxu0 0
    %163 = vmatprep.subr.bf16.mxu0 0
    %164 = vmatpush1.bf16.msra.mxu0 0
    %165 = vmatprep.subr.bf16.mxu0 0
    %166 = vmatpush1.bf16.msra.mxu0 0
    %167 = vmatprep.subr.bf16.mxu0 0
    %168 = vmatpush1.bf16.msra.mxu0 0
    %169 = vmatprep.subr.bf16.mxu0 0
    %170 = vmatpush1.bf16.msra.mxu0 0
    %171 = vmatprep.mubr.bf16.mxu0 0
    %172 = vmatmul.mubr.bf16.gmra.mrb[0].mxu0 %v137
    %v173 = vpop.f32.mrb[0].mxu0
    %v174 = vadd.f32 %v116, %v173
    %v175 = vpop.f32.mrb[0].mxu0
    %v176 = vpop.f32.mrb[0].mxu0
    %v177 = vadd.f32 %v116, %v176
    %v178 = vpop.f32.mrb[0].mxu0
    %179 = vdwg.mxu0
    %v180 = vld [vmem:[#allocation2] sm:$0xff]
    %v181 = vld [vmem:[%s5] sm:$0xf]
    %v182 = vld [vmem:[%s5 + $0x4] sm:$0xf]
    %v183 = vld [vmem:[%s5 + $0x8] sm:$0xf]
    %v184 = vld [vmem:[%s5 + $0xc] sm:$0xf]
    %v185 = vld [vmem:[%s5 + $0x10] sm:$0xf]
    %v186 = vld [vmem:[%s5 + $0x14] sm:$0xf]
    %v187 = vld [vmem:[%s5 + $0x18] sm:$0xf]
    %v188 = vld [vmem:[%s5 + $0x1c] sm:$0xf]
    %v189 = vld [vmem:[%s5 + $0x20] sm:$0xf]
    %v190 = vld [vmem:[%s5 + $0x24] sm:$0xf]
    %v191 = vld [vmem:[%s5 + $0x28] sm:$0xf]
    %v192 = vld [vmem:[%s5 + $0x2c] sm:$0xf]
    %v193 = vld [vmem:[%s5 + $0x30] sm:$0xf]
    %v194 = vld [vmem:[%s5 + $0x34] sm:$0xf]
    %v195 = vld [vmem:[%s5 + $0x38] sm:$0xf]
    %v196 = vld [vmem:[%s5 + $0x3c] sm:$0xf]
    %v213 = vunpack.c.l.b16 %v181
    %v214 = vunpack.c.l.b16 %v182
    %v215 = vunpack.c.l.b16 %v183
    %v216 = vunpack.c.l.b16 %v184
    %v217 = vunpack.c.l.b16 %v185
    %v218 = vunpack.c.l.b16 %v186
    %v219 = vunpack.c.l.b16 %v187
    %v220 = vunpack.c.l.b16 %v188
    %v221 = vunpack.c.l.b16 %v189
    %v222 = vunpack.c.l.b16 %v190
    %v223 = vunpack.c.l.b16 %v191
    %v224 = vunpack.c.l.b16 %v192
    %v225 = vunpack.c.l.b16 %v193
    %v226 = vunpack.c.l.b16 %v194
    %v227 = vunpack.c.l.b16 %v195
    %v228 = vunpack.c.l.b16 %v196
    %v229 = vpack.c.b16 %v214, %v213
    %v230 = vpack.c.b16 %v216, %v215
    %v231 = vpack.c.b16 %v218, %v217
    %v232 = vpack.c.b16 %v220, %v219
    %v233 = vpack.c.b16 %v222, %v221
    %v234 = vpack.c.b16 %v224, %v223
    %v235 = vpack.c.b16 %v226, %v225
    %v236 = vpack.c.b16 %v228, %v227
    %245 = vmatprep.subr.bf16.mxu0 0
    %246 = vmatpush1.bf16.msra.mxu0 %v229
    %247 = vmatprep.subr.bf16.mxu0 0
    %248 = vmatpush1.bf16.msra.mxu0 %v230
    %249 = vmatprep.subr.bf16.mxu0 0
    %250 = vmatpush1.bf16.msra.mxu0 %v231
    %251 = vmatprep.subr.bf16.mxu0 0
    %252 = vmatpush1.bf16.msra.mxu0 %v232
    %253 = vmatprep.subr.bf16.mxu0 0
    %254 = vmatpush1.bf16.msra.mxu0 %v233
    %255 = vmatprep.subr.bf16.mxu0 0
    %256 = vmatpush1.bf16.msra.mxu0 %v234
    %257 = vmatprep.subr.bf16.mxu0 0
    %258 = vmatpush1.bf16.msra.mxu0 %v235
    %259 = vmatprep.subr.bf16.mxu0 0
    %260 = vmatpush1.bf16.msra.mxu0 %v236
    %261 = vmatprep.subr.bf16.mxu0 0
    %262 = vmatpush1.bf16.msra.mxu0 0
    %263 = vmatprep.subr.bf16.mxu0 0
    %264 = vmatpush1.bf16.msra.mxu0 0
    %265 = vmatprep.subr.bf16.mxu0 0
    %266 = vmatpush1.bf16.msra.mxu0 0
    %267 = vmatprep.subr.bf16.mxu0 0
    %268 = vmatpush1.bf16.msra.mxu0 0
    %269 = vmatprep.subr.bf16.mxu0 0
    %270 = vmatpush1.bf16.msra.mxu0 0
    %271 = vmatprep.subr.bf16.mxu0 0
    %272 = vmatpush1.bf16.msra.mxu0 0
    %273 = vmatprep.subr.bf16.mxu0 0
    %274 = vmatpush1.bf16.msra.mxu0 0
    %275 = vmatprep.subr.bf16.mxu0 0
    %276 = vmatpush1.bf16.msra.mxu0 0
    %277 = vmatprep.mubr.bf16.mxu0 0
    %278 = vmatmul.mubr.bf16.gmra.mrb[0].mxu0 %v180
    %v279 = vpop.f32.mrb[0].mxu0
    %v280 = vadd.f32 0.0, %v279
    %v281 = vpop.f32.mrb[0].mxu0
    %v282 = vpop.f32.mrb[0].mxu0
    %v283 = vadd.f32 0.0, %v282
    %v284 = vpop.f32.mrb[0].mxu0
    %285 = vdwg.mxu0
    %v286 = vadd.f32 %v174, %v280
    %v287 = vadd.f32 %v177, %v283
    %288 = vst.msk [vmem:[#allocation3] sm:$0xff] %vm135, %v286
    %289 = vst.msk [vmem:[#allocation3 + $0x8] sm:$0xff] %vm135, %v287
    // Predicated region
    $region30: #{tpu_custom_call.1} parent=1 // pred_check
      _
    $region31: #{tpu_custom_call.1} parent=1 // pred_check_branch
      %291 = sbr.rel (0) target = $region33
    $region32: #{tpu_custom_call.1} parent=1 // pred_region
      %s293 = ssub.s32 256, 256
      %294 = vsyncadd [#allocation4], %s293
      %s295 = sshll.u32 [#allocation3], 4
      %s296 = int_to_ptr.vmem [resolvable:$true] %s295
      %301 = dma.vmem_to_hbm [thread:$0]  %s296, 256, %s6, [#allocation4], 128, 128, 8
    $region33: #{tpu_custom_call.1} parent=1 // pred_fallthru
      _
    // Predicated region
    $region34: #{tpu_custom_call.1} parent=1 // pred_check
      _
    $region35: #{tpu_custom_call.1} parent=1 // pred_check_branch
      %303 = sbr.rel (0) target = $region37
    $region36: #{tpu_custom_call.1} parent=1 // pred_region
      %304 = dma.done [#allocation4], 256
    $region37: #{tpu_custom_call.1} parent=1 // pred_fallthru
      _
    %305 = vsyncpa [#allocation4], 1

</llo_original>
